<compile_context>
chip_gen: v6e
topology: v6e:2x2x1
jax: 0.10.0
libtpu: 0.0.40
codegen_flags: <defaults>
</compile_context>

<pallas_src>
import numpy as np
import jax
import jax.numpy as jnp
from jax import lax
from jax.experimental import pallas as pl
from jax.experimental.pallas import tpu as pltpu


# ----------------------------------------------------------------------------
# Host-built constant indicator matrices (exact 0/1 entries, stored bf16).
#   pool_h (HW, H): x(C,HW) @ pool_h = per-row sums   (scale by 1/W afterwards)
#   pool_w (HW, W): x(C,HW) @ pool_w = per-col sums   (scale by 1/H afterwards)
#   bh     (H, HW): (a(C,H) @ bh)[c, hw] = a[c, hw // W]
#   bw     (W, HW): (a(C,W) @ bw)[c, hw] = a[c, hw %  W]
# ----------------------------------------------------------------------------
def build_index_matrices(H, W, dtype=jnp.bfloat16):
    HW = H * W
    hw = np.arange(HW)
    h_idx, w_idx = hw // W, hw % W
    pool_h = np.zeros((HW, H), np.float32)
    pool_h[hw, h_idx] = 1.0
    pool_w = np.zeros((HW, W), np.float32)
    pool_w[hw, w_idx] = 1.0
    return dict(pool_h=jnp.asarray(pool_h, dtype),
                pool_w=jnp.asarray(pool_w, dtype),
                bh=jnp.asarray(pool_h.T, dtype),
                bw=jnp.asarray(pool_w.T, dtype))


# ----------------------------------------------------------------------------
# Fused CoordAtt kernel. One grid step = nb batch items (statically unrolled).
# x_ref: (nb, C, HW) bf16; all parameter/constant refs have constant index maps.
# ----------------------------------------------------------------------------
def make_coordatt_kernel(nb, inv_h, inv_w):
    def kernel(x_ref, w1_ref, sc1_ref, w2_ref, w3_ref, b23_ref,
               ph_ref, pw_ref, bh_ref, bw_ref, o_ref):
        # Block-invariant operands: load once, hoisted out of the batch loop.
        w1, w2, w3 = w1_ref[...], w2_ref[...], w3_ref[...]
        s1, c1 = sc1_ref[:, 0:1], sc1_ref[:, 1:2]          # (mip,1) f32
        b2, b3 = b23_ref[:, 0:1], b23_ref[:, 1:2]          # (oup,1) f32
        ph, pw = ph_ref[...], pw_ref[...]                  # (HW,H)/(HW,W) bf16
        bh, bw = bh_ref[...], bw_ref[...]                  # (H,HW)/(W,HW) bf16

        def gate(xb, pool, inv, w_last, b_last, bcast):
            # Mean-pool: exact 0/1 indicator matmul (f32 acc) + exact f32 scale.
            y = jnp.dot(xb, pool, preferred_element_type=jnp.float32) * inv
            # conv1 (1x1) + folded inference BatchNorm + ReLU.
            y = lax.dot_general(w1, y.astype(jnp.bfloat16),
                                (((1,), (0,)), ((), ())),
                                preferred_element_type=jnp.float32)
            y = jnp.maximum(y * s1 + c1, 0.0)
            # conv2 / conv3 (1x1) + sigmoid (exp on EUP, approx reciprocal).
            z = lax.dot_general(w_last, y.astype(jnp.bfloat16),
                                (((1,), (0,)), ((), ())),
                                preferred_element_type=jnp.float32) + b_last
            a = pl.reciprocal(1.0 + jnp.exp(-z), approx=True)
            # Broadcast the gate back over the flat lane-dense spatial axis.
            return jnp.dot(a.astype(jnp.bfloat16), bcast,
                           preferred_element_type=jnp.float32)

        for b in range(nb):                                 # static unroll
            xb = x_ref[b]                                   # (C, HW) bf16
            gh = gate(xb, ph, inv_w, w2, b2, bh)            # (oup, HW) f32
            gw = gate(xb, pw, inv_h, w3, b3, bw)            # (oup, HW) f32
            o_ref[b] = (xb.astype(jnp.float32) * gh * gw).astype(o_ref.dtype)

    return kernel


def _padded_bytes(shape, dtype):
    itemsize = np.dtype(dtype).itemsize
    dims = list(shape)
    if dims:
        dims[-1] = -(-dims[-1] // 128) * 128
    if len(dims) >= 2:
        sub = max(8, 32 // itemsize)
        dims[-2] = -(-dims[-2] // sub) * sub
    n = 1
    for d in dims:
        n *= int(d)
    return n * itemsize


def _pick_batch_block(N, item_bytes, target_bytes=1 << 20):
    nb = 1
    for cand in range(1, N + 1):
        if N % cand:
            continue
        if cand * item_bytes > target_bytes:
            continue
        if N >= 2 and N // cand < 2:   # keep >=2 grid steps for v7x megacore
            continue
        nb = cand
    return nb


def coordatt_forward(x_nchw, fp, consts):
    """Fused Pallas CoordAtt forward. Input NCHW; returns bf16 NCHW."""
    N, C, H, W = x_nchw.shape
    HW = H * W
    mip = fp["w1"].shape[0]
    oup = fp["w2"].shape[0]
    assert oup == C, "CoordAtt final elementwise product requires oup == inp"

    x2 = x_nchw.astype(jnp.bfloat16).reshape(N, C, HW)   # contiguous reshape
    nb = _pick_batch_block(N, C * HW * 2)
    grid = (N // nb,)

    operands = (x2, fp["w1"], fp["sc1"], fp["w2"], fp["w3"], fp["b23"],
                consts["pool_h"], consts["pool_w"], consts["bh"], consts["bw"])

    in_specs = [pl.BlockSpec((nb, C, HW), lambda n: (n, 0, 0))]
    for op in operands[1:]:
        in_specs.append(
            pl.BlockSpec(op.shape, lambda n, nd=op.ndim: (0,) * nd))

    # VMEM budget: double-buffered x in/out + (conservatively double-buffered)
    # block-invariant operands + slack; capped under v7x's 64 MiB.
    blk_bytes = _padded_bytes((nb, C, HW), jnp.bfloat16)
    const_bytes = sum(_padded_bytes(op.shape, op.dtype) for op in operands[1:])
    vmem_budget = 4 * blk_bytes + 2 * const_bytes + (2 << 20)
    vmem_limit = int(min(max(vmem_budget, 32 << 20), 56 << 20))

    flops = N * (2 * C * HW * (H + W)            # pooling matmuls
                 + 2 * mip * C * (H + W)         # conv1
                 + 2 * oup * mip * (H + W)       # conv2 + conv3
                 + 2 * oup * HW * (H + W)        # gate broadcast matmuls
                 + 3 * C * HW)                   # final elementwise product
    bytes_accessed = 2 * N * C * HW * 2 + sum(
        int(np.prod(op.shape)) * np.dtype(op.dtype).itemsize
        for op in operands[1:])

    out2 = pl.pallas_call(
        make_coordatt_kernel(nb, 1.0 / H, 1.0 / W),
        out_shape=jax.ShapeDtypeStruct((N, C, HW), jnp.bfloat16),
        grid=grid,
        in_specs=in_specs,
        out_specs=pl.BlockSpec((nb, C, HW), lambda n: (n, 0, 0)),
        compiler_params=pltpu.CompilerParams(
            dimension_semantics=("parallel",),
            vmem_limit_bytes=vmem_limit),
        cost_estimate=pl.CostEstimate(
            flops=int(flops),
            transcendentals=int(N * oup * (H + W)),
            bytes_accessed=int(bytes_accessed)),
    )(*operands)

    return out2.reshape(N, C, H, W)


# ----------------------------------------------------------------------------
# Parameters (deterministic) and one-time folding/packing (outside forward).
# ----------------------------------------------------------------------------
def make_params(key, inp, oup, groups=32):
    mip = max(8, inp // groups)
    k = jax.random.split(key, 6)
    return dict(
        w1=0.2 * jax.random.normal(k[0], (mip, inp), jnp.float32),
        b1=0.1 * jax.random.normal(k[1], (mip,), jnp.float32),
        w2=0.2 * jax.random.normal(k[2], (oup, mip), jnp.float32),
        b2=0.1 * jax.random.normal(k[3], (oup,), jnp.float32),
        w3=0.2 * jax.random.normal(k[4], (oup, mip), jnp.float32),
        b3=0.1 * jax.random.normal(k[5], (oup,), jnp.float32),
        bn1=dict(gamma=1.0 + 0.1 * jnp.arange(mip, dtype=jnp.float32),
                 beta=0.05 * jnp.arange(mip, dtype=jnp.float32),
                 mean=0.01 * jnp.arange(mip, dtype=jnp.float32),
                 var=1.0 + 0.02 * jnp.arange(mip, dtype=jnp.float32)))


def prepare_params(p, eps=1e-5):
    """Fold conv1 bias + inference BN into scale/bias; bf16 weights; pack vectors."""
    bn = p["bn1"]
    scale1 = bn["gamma"] / jnp.sqrt(bn["var"] + eps)
    bias1 = scale1 * (p["b1"] - bn["mean"]) + bn["beta"]
    sc1 = jnp.stack([scale1, bias1], axis=1).astype(jnp.float32)     # (mip, 2)
    b23 = jnp.stack([p["b2"], p["b3"]], axis=1).astype(jnp.float32)  # (oup, 2)
    return dict(w1=p["w1"].astype(jnp.bfloat16),
                w2=p["w2"].astype(jnp.bfloat16),
                w3=p["w3"].astype(jnp.bfloat16),
                sc1=sc1, b23=b23)


# ----------------------------------------------------------------------------
# Pure-JAX f32 reference (mirrors the PyTorch forward; correctness check only).
# ----------------------------------------------------------------------------
def ref_forward(x, p, eps=1e-5):
    N, C, H, W = x.shape
    bn = p["bn1"]
    x_h = jnp.mean(x, axis=3)                                   # (N,C,H)
    x_w = jnp.mean(x, axis=2)                                   # (N,C,W)
    y = jnp.concatenate([x_h, x_w], axis=2)                     # (N,C,H+W)
    y = jnp.einsum("mc,ncp->nmp", p["w1"], y) + p["b1"][None, :, None]
    y = (y - bn["mean"][None, :, None]) / jnp.sqrt(bn["var"][None, :, None] + eps)
    y = y * bn["gamma"][None, :, None] + bn["beta"][None, :, None]
    y = jnp.maximum(y, 0.0)
    yh, yw = y[:, :, :H], y[:, :, H:]
    ah = jax.nn.sigmoid(jnp.einsum("om,nmh->noh", p["w2"], yh)
                        + p["b2"][None, :, None])               # (N,oup,H)
    aw = jax.nn.sigmoid(jnp.einsum("om,nmw->now", p["w3"], yw)
                        + p["b3"][None, :, None])               # (N,oup,W)
    return x * ah[:, :, :, None] * aw[:, :, None, :]


if __name__ == "__main__":
    B, C, H, W = 2, 4, 16, 16          # inp == oup == 4, groups=32 -> mip = 8
    key = jax.random.PRNGKey(0)
    kx, kp = jax.random.split(key)
    x = jax.random.normal(kx, (B, C, H, W), jnp.float32)
    params = make_params(kp, inp=C, oup=C, groups=32)

    folded = prepare_params(params)                 # hoisted out of forward
    consts = build_index_matrices(H, W)             # constants, built once

    out = jax.block_until_ready(coordatt_forward(x, folded, consts))
    ref = jax.block_until_ready(ref_forward(x, params))

    assert out.shape == (B, C, H, W), out.shape
    np.testing.assert_allclose(np.asarray(out, dtype=np.float32),
                               np.asarray(ref), rtol=3e-2, atol=3e-2)
    print("KERNEL_OK")
</pallas_src>

<mosaic_0001>
module attributes {stable_mosaic.version = 11 : i64} {
  func.func @kernel(%arg0: i32, %arg1: memref<1x4x256xbf16, #tpu.memory_space<vmem>>, %arg2: memref<8x4xbf16, #tpu.memory_space<vmem>>, %arg3: memref<8x2xf32, #tpu.memory_space<vmem>>, %arg4: memref<4x8xbf16, #tpu.memory_space<vmem>>, %arg5: memref<4x8xbf16, #tpu.memory_space<vmem>>, %arg6: memref<4x2xf32, #tpu.memory_space<vmem>>, %arg7: memref<256x16xbf16, #tpu.memory_space<vmem>>, %arg8: memref<256x16xbf16, #tpu.memory_space<vmem>>, %arg9: memref<16x256xbf16, #tpu.memory_space<vmem>>, %arg10: memref<16x256xbf16, #tpu.memory_space<vmem>>, %arg11: memref<1x4x256xbf16, #tpu.memory_space<vmem>>) attributes {dimension_semantics = [#tpu.dimension_semantics<parallel>], iteration_bounds = array<i64: 2>, scalar_prefetch = 0 : i64, scratch_operands = 0 : i64, tpu.core_type = #tpu.core_type<tc>, window_params = [{transform_indices = @transform_0, window_bounds = array<i64: 1, 4, 256>}, {pipeline_mode = #tpu.pipeline_mode<synchronous>, transform_indices = @transform_1, window_bounds = array<i64: 8, 4>}, {pipeline_mode = #tpu.pipeline_mode<synchronous>, transform_indices = @transform_2, window_bounds = array<i64: 8, 2>}, {pipeline_mode = #tpu.pipeline_mode<synchronous>, transform_indices = @transform_3, window_bounds = array<i64: 4, 8>}, {pipeline_mode = #tpu.pipeline_mode<synchronous>, transform_indices = @transform_4, window_bounds = array<i64: 4, 8>}, {pipeline_mode = #tpu.pipeline_mode<synchronous>, transform_indices = @transform_5, window_bounds = array<i64: 4, 2>}, {pipeline_mode = #tpu.pipeline_mode<synchronous>, transform_indices = @transform_6, window_bounds = array<i64: 256, 16>}, {pipeline_mode = #tpu.pipeline_mode<synchronous>, transform_indices = @transform_7, window_bounds = array<i64: 256, 16>}, {pipeline_mode = #tpu.pipeline_mode<synchronous>, transform_indices = @transform_8, window_bounds = array<i64: 16, 256>}, {pipeline_mode = #tpu.pipeline_mode<synchronous>, transform_indices = @transform_9, window_bounds = array<i64: 16, 256>}, {transform_indices = @transform_10, window_bounds = array<i64: 1, 4, 256>}]} {
    %c0 = arith.constant 0 : index
    %c0_0 = arith.constant 0 : index
    %0 = vector.load %arg2[%c0, %c0_0] : memref<8x4xbf16, #tpu.memory_space<vmem>>, vector<8x4xbf16>
    %c0_1 = arith.constant 0 : index
    %c0_2 = arith.constant 0 : index
    %1 = vector.load %arg4[%c0_1, %c0_2] : memref<4x8xbf16, #tpu.memory_space<vmem>>, vector<4x8xbf16>
    %c0_3 = arith.constant 0 : index
    %c0_4 = arith.constant 0 : index
    %2 = vector.load %arg5[%c0_3, %c0_4] : memref<4x8xbf16, #tpu.memory_space<vmem>>, vector<4x8xbf16>
    %c0_5 = arith.constant 0 : index
    %c0_6 = arith.constant 0 : index
    %3 = vector.load %arg3[%c0_5, %c0_6] : memref<8x2xf32, #tpu.memory_space<vmem>>, vector<8x1xf32>
    %c0_7 = arith.constant 0 : index
    %c1 = arith.constant 1 : index
    %4 = vector.load %arg3[%c0_7, %c1] : memref<8x2xf32, #tpu.memory_space<vmem>>, vector<8x1xf32>
    %c0_8 = arith.constant 0 : index
    %c0_9 = arith.constant 0 : index
    %5 = vector.load %arg6[%c0_8, %c0_9] : memref<4x2xf32, #tpu.memory_space<vmem>>, vector<4x1xf32>
    %c0_10 = arith.constant 0 : index
    %c1_11 = arith.constant 1 : index
    %6 = vector.load %arg6[%c0_10, %c1_11] : memref<4x2xf32, #tpu.memory_space<vmem>>, vector<4x1xf32>
    %c0_12 = arith.constant 0 : index
    %c0_13 = arith.constant 0 : index
    %7 = vector.load %arg7[%c0_12, %c0_13] : memref<256x16xbf16, #tpu.memory_space<vmem>>, vector<256x16xbf16>
    %c0_14 = arith.constant 0 : index
    %c0_15 = arith.constant 0 : index
    %8 = vector.load %arg8[%c0_14, %c0_15] : memref<256x16xbf16, #tpu.memory_space<vmem>>, vector<256x16xbf16>
    %c0_16 = arith.constant 0 : index
    %c0_17 = arith.constant 0 : index
    %9 = vector.load %arg9[%c0_16, %c0_17] : memref<16x256xbf16, #tpu.memory_space<vmem>>, vector<16x256xbf16>
    %c0_18 = arith.constant 0 : index
    %c0_19 = arith.constant 0 : index
    %10 = vector.load %arg10[%c0_18, %c0_19] : memref<16x256xbf16, #tpu.memory_space<vmem>>, vector<16x256xbf16>
    %c0_20 = arith.constant 0 : index
    %c0_21 = arith.constant 0 : index
    %c0_22 = arith.constant 0 : index
    %11 = vector.load %arg1[%c0_20, %c0_21, %c0_22] : memref<1x4x256xbf16, #tpu.memory_space<vmem>>, vector<1x4x256xbf16>
    %12 = vector.shape_cast %11 : vector<1x4x256xbf16> to vector<4x256xbf16>
    %cst = arith.constant dense<0.000000e+00> : vector<4x16xf32>
    %13 = tpu.matmul %12, %7, %cst {dimension_numbers = #tpu.dot_dimension_numbers<[1], [0], [0], [1], [0, 0, 1, 1], [], []>} : vector<4x256xbf16>, vector<256x16xbf16>, vector<4x16xf32> -> vector<4x16xf32>
    %cst_23 = arith.constant 6.250000e-02 : f32
    %14 = vector.broadcast %cst_23 : f32 to vector<4x16xf32>
    %15 = arith.mulf %13, %14 : vector<4x16xf32>
    %16 = arith.truncf %15 : vector<4x16xf32> to vector<4x16xbf16>
    %cst_24 = arith.constant dense<0.000000e+00> : vector<8x16xf32>
    %17 = tpu.matmul %0, %16, %cst_24 {dimension_numbers = #tpu.dot_dimension_numbers<[1], [0], [0], [1], [0, 0, 1, 1], [], []>} : vector<8x4xbf16>, vector<4x16xbf16>, vector<8x16xf32> -> vector<8x16xf32>
    %18 = vector.broadcast %3 : vector<8x1xf32> to vector<8x16xf32>
    %19 = arith.mulf %17, %18 : vector<8x16xf32>
    %20 = vector.broadcast %4 : vector<8x1xf32> to vector<8x16xf32>
    %21 = arith.addf %19, %20 : vector<8x16xf32>
    %cst_25 = arith.constant 0.000000e+00 : f32
    %22 = vector.broadcast %cst_25 : f32 to vector<8x16xf32>
    %23 = arith.maximumf %21, %22 : vector<8x16xf32>
    %24 = arith.truncf %23 : vector<8x16xf32> to vector<8x16xbf16>
    %cst_26 = arith.constant dense<0.000000e+00> : vector<4x16xf32>
    %25 = tpu.matmul %1, %24, %cst_26 {dimension_numbers = #tpu.dot_dimension_numbers<[1], [0], [0], [1], [0, 0, 1, 1], [], []>} : vector<4x8xbf16>, vector<8x16xbf16>, vector<4x16xf32> -> vector<4x16xf32>
    %26 = vector.broadcast %5 : vector<4x1xf32> to vector<4x16xf32>
    %27 = arith.addf %25, %26 : vector<4x16xf32>
    %cst_27 = arith.constant 0.000000e+00 : f32
    %28 = vector.broadcast %cst_27 : f32 to vector<4x16xf32>
    %29 = arith.subf %28, %27 : vector<4x16xf32>
    %30 = math.exp %29 : vector<4x16xf32>
    %cst_28 = arith.constant 1.000000e+00 : f32
    %31 = vector.broadcast %cst_28 : f32 to vector<4x16xf32>
    %32 = arith.addf %31, %30 : vector<4x16xf32>
    %33 = tpu.reciprocal %32 {approx = true} : vector<4x16xf32> -> vector<4x16xf32>
    %34 = arith.truncf %33 : vector<4x16xf32> to vector<4x16xbf16>
    %cst_29 = arith.constant dense<0.000000e+00> : vector<4x256xf32>
    %35 = tpu.matmul %34, %9, %cst_29 {dimension_numbers = #tpu.dot_dimension_numbers<[1], [0], [0], [1], [0, 0, 1, 1], [], []>} : vector<4x16xbf16>, vector<16x256xbf16>, vector<4x256xf32> -> vector<4x256xf32>
    %cst_30 = arith.constant dense<0.000000e+00> : vector<4x16xf32>
    %36 = tpu.matmul %12, %8, %cst_30 {dimension_numbers = #tpu.dot_dimension_numbers<[1], [0], [0], [1], [0, 0, 1, 1], [], []>} : vector<4x256xbf16>, vector<256x16xbf16>, vector<4x16xf32> -> vector<4x16xf32>
    %cst_31 = arith.constant 6.250000e-02 : f32
    %37 = vector.broadcast %cst_31 : f32 to vector<4x16xf32>
    %38 = arith.mulf %36, %37 : vector<4x16xf32>
    %39 = arith.truncf %38 : vector<4x16xf32> to vector<4x16xbf16>
    %cst_32 = arith.constant dense<0.000000e+00> : vector<8x16xf32>
    %40 = tpu.matmul %0, %39, %cst_32 {dimension_numbers = #tpu.dot_dimension_numbers<[1], [0], [0], [1], [0, 0, 1, 1], [], []>} : vector<8x4xbf16>, vector<4x16xbf16>, vector<8x16xf32> -> vector<8x16xf32>
    %41 = vector.broadcast %3 : vector<8x1xf32> to vector<8x16xf32>
    %42 = arith.mulf %40, %41 : vector<8x16xf32>
    %43 = vector.broadcast %4 : vector<8x1xf32> to vector<8x16xf32>
    %44 = arith.addf %42, %43 : vector<8x16xf32>
    %cst_33 = arith.constant 0.000000e+00 : f32
    %45 = vector.broadcast %cst_33 : f32 to vector<8x16xf32>
    %46 = arith.maximumf %44, %45 : vector<8x16xf32>
    %47 = arith.truncf %46 : vector<8x16xf32> to vector<8x16xbf16>
    %cst_34 = arith.constant dense<0.000000e+00> : vector<4x16xf32>
    %48 = tpu.matmul %2, %47, %cst_34 {dimension_numbers = #tpu.dot_dimension_numbers<[1], [0], [0], [1], [0, 0, 1, 1], [], []>} : vector<4x8xbf16>, vector<8x16xbf16>, vector<4x16xf32> -> vector<4x16xf32>
    %49 = vector.broadcast %6 : vector<4x1xf32> to vector<4x16xf32>
    %50 = arith.addf %48, %49 : vector<4x16xf32>
    %cst_35 = arith.constant 0.000000e+00 : f32
    %51 = vector.broadcast %cst_35 : f32 to vector<4x16xf32>
    %52 = arith.subf %51, %50 : vector<4x16xf32>
    %53 = math.exp %52 : vector<4x16xf32>
    %cst_36 = arith.constant 1.000000e+00 : f32
    %54 = vector.broadcast %cst_36 : f32 to vector<4x16xf32>
    %55 = arith.addf %54, %53 : vector<4x16xf32>
    %56 = tpu.reciprocal %55 {approx = true} : vector<4x16xf32> -> vector<4x16xf32>
    %57 = arith.truncf %56 : vector<4x16xf32> to vector<4x16xbf16>
    %cst_37 = arith.constant dense<0.000000e+00> : vector<4x256xf32>
    %58 = tpu.matmul %57, %10, %cst_37 {dimension_numbers = #tpu.dot_dimension_numbers<[1], [0], [0], [1], [0, 0, 1, 1], [], []>} : vector<4x16xbf16>, vector<16x256xbf16>, vector<4x256xf32> -> vector<4x256xf32>
    %59 = arith.extf %12 : vector<4x256xbf16> to vector<4x256xf32>
    %60 = arith.mulf %59, %35 : vector<4x256xf32>
    %61 = arith.mulf %60, %58 : vector<4x256xf32>
    %62 = arith.truncf %61 : vector<4x256xf32> to vector<4x256xbf16>
    %c0_38 = arith.constant 0 : index
    %c0_39 = arith.constant 0 : index
    %c0_40 = arith.constant 0 : index
    %63 = vector.load %arg11[%c0_38, %c0_39, %c0_40] : memref<1x4x256xbf16, #tpu.memory_space<vmem>>, vector<1x4x256xbf16>
    %64 = vector.shape_cast %63 : vector<1x4x256xbf16> to vector<4x256xbf16>
    %65 = vector.shape_cast %62 : vector<4x256xbf16> to vector<1x4x256xbf16>
    tpu.vector_store %arg11[%c0_38, %c0_39, %c0_40], %65 {strides = array<i32>} : memref<1x4x256xbf16, #tpu.memory_space<vmem>>, vector<1x4x256xbf16>,
    return
  }
  func.func @transform_0(%arg0: i32) -> (i32, i32, i32) {
    %c0_i32 = arith.constant 0 : i32
    %c0_i32_0 = arith.constant 0 : i32
    %c0_i32_1 = arith.constant 0 : i32
    return %arg0, %c0_i32, %c0_i32_0 : i32, i32, i32
  }
  func.func @transform_1(%arg0: i32) -> (i32, i32) {
    %c0_i32 = arith.constant 0 : i32
    %c0_i32_0 = arith.constant 0 : i32
    %c0_i32_1 = arith.constant 0 : i32
    return %c0_i32, %c0_i32_0 : i32, i32
  }
  func.func @transform_2(%arg0: i32) -> (i32, i32) {
    %c0_i32 = arith.constant 0 : i32
    %c0_i32_0 = arith.constant 0 : i32
    %c0_i32_1 = arith.constant 0 : i32
    return %c0_i32, %c0_i32_0 : i32, i32
  }
  func.func @transform_3(%arg0: i32) -> (i32, i32) {
    %c0_i32 = arith.constant 0 : i32
    %c0_i32_0 = arith.constant 0 : i32
    %c0_i32_1 = arith.constant 0 : i32
    return %c0_i32, %c0_i32_0 : i32, i32
  }
  func.func @transform_4(%arg0: i32) -> (i32, i32) {
    %c0_i32 = arith.constant 0 : i32
    %c0_i32_0 = arith.constant 0 : i32
    %c0_i32_1 = arith.constant 0 : i32
    return %c0_i32, %c0_i32_0 : i32, i32
  }
  func.func @transform_5(%arg0: i32) -> (i32, i32) {
    %c0_i32 = arith.constant 0 : i32
    %c0_i32_0 = arith.constant 0 : i32
    %c0_i32_1 = arith.constant 0 : i32
    return %c0_i32, %c0_i32_0 : i32, i32
  }
  func.func @transform_6(%arg0: i32) -> (i32, i32) {
    %c0_i32 = arith.constant 0 : i32
    %c0_i32_0 = arith.constant 0 : i32
    %c0_i32_1 = arith.constant 0 : i32
    return %c0_i32, %c0_i32_0 : i32, i32
  }
  func.func @transform_7(%arg0: i32) -> (i32, i32) {
    %c0_i32 = arith.constant 0 : i32
    %c0_i32_0 = arith.constant 0 : i32
    %c0_i32_1 = arith.constant 0 : i32
    return %c0_i32, %c0_i32_0 : i32, i32
  }
  func.func @transform_8(%arg0: i32) -> (i32, i32) {
    %c0_i32 = arith.constant 0 : i32
    %c0_i32_0 = arith.constant 0 : i32
    %c0_i32_1 = arith.constant 0 : i32
    return %c0_i32, %c0_i32_0 : i32, i32
  }
  func.func @transform_9(%arg0: i32) -> (i32, i32) {
    %c0_i32 = arith.constant 0 : i32
    %c0_i32_0 = arith.constant 0 : i32
    %c0_i32_1 = arith.constant 0 : i32
    return %c0_i32, %c0_i32_0 : i32, i32
  }
  func.func @transform_10(%arg0: i32) -> (i32, i32, i32) {
    %c0_i32 = arith.constant 0 : i32
    %c0_i32_0 = arith.constant 0 : i32
    %c0_i32_1 = arith.constant 0 : i32
    return %arg0, %c0_i32, %c0_i32_0 : i32, i32, i32
  }
}

</mosaic_0001>

<llo_original>
// kernel: tpu_custom_call.1
$region0: #{tpu_custom_call.1}
  #allocation0 [shape = 'u32[]', space=smem, size = 0x4, offset = 0x4, fixed_abs, tag = 'smem constant byte address 0x4 - core index']
  #allocation1 [shape = 'u32[144,128]{1,0:T(1,128)}', space=vmem, size = 0x12000, scoped, tag = 'internal scratch']
  %s0 = inlined_call_operand.vmem [shape: bf16[2,4,256], index: 0, kind: input, shape index: {}]
  %s1 = inlined_call_operand.vmem [shape: bf16[8,4], index: 1, kind: input, shape index: {}]
  %s2 = inlined_call_operand.vmem [shape: f32[8,2], index: 2, kind: input, shape index: {}]
  %s3 = inlined_call_operand.vmem [shape: bf16[4,8], index: 3, kind: input, shape index: {}]
  %s4 = inlined_call_operand.vmem [shape: bf16[4,8], index: 4, kind: input, shape index: {}]
  %s5 = inlined_call_operand.vmem [shape: f32[4,2], index: 5, kind: input, shape index: {}]
  %s6 = inlined_call_operand.vmem [shape: bf16[256,16], index: 6, kind: input, shape index: {}]
  %s7 = inlined_call_operand.vmem [shape: bf16[256,16], index: 7, kind: input, shape index: {}]
  %s8 = inlined_call_operand.vmem [shape: bf16[16,256], index: 8, kind: input, shape index: {}]
  %s9 = inlined_call_operand.vmem [shape: bf16[16,256], index: 9, kind: input, shape index: {}]
  %s10 = inlined_call_operand.hbm [shape: bf16[2,4,256], index: 10, kind: output, shape index: {}]
  %s11 = sld [smem:[#allocation0]]
  $region73: #{tpu_custom_call.1} parent=0
    _
  %s13 = ssub.s32 1, %s11
  %s14 = scalar_select 0, %s13, %s11
  $region1: #{tpu_custom_call.1} parent=0
    #allocation2 [shape = 'u8[4096]{0}', space=vmem, size = 0x1000, scoped, tag = 'output window, operand 0']
    #allocation3 [shape = 's32[2]{0}', space=sflag, size = 0x8, scoped, tag = 'scoped memory for tpu_custom_call.1']
    %15 = vsyncpa [#allocation3], 0
    %s16 = scalar_lea.sflag [#allocation3], 1
    %17 = vsyncpa %s16, 0
    loop: start=0, step=1, limit=4
    $region2: #{tpu_custom_call.1} parent=1 // loop_pre_header
      _
    $region3: #{tpu_custom_call.1} parent=1 // loop_header
      %s19 = sphi 0, %s23
      %p20 = scmp.ge.s32.totalorder %s19, 4
      %s29 = sphi 0, %s31
      %s32 = sphi 0, %s29
      %s33 = sphi 0, %s32
      %s49 = sphi 0, %s33
      %s53 = sphi 0, %s53
      %s55 = sphi 0, %s53
      %s56 = sphi 0, %s55
      %s70 = sphi 0, %s56
      %s74 = sphi 0, %s74
      %s76 = sphi 0, %s74
      %s77 = sphi 0, %s76
      %s91 = sphi 0, %s77
      %s95 = sphi 0, %s95
      %s97 = sphi 0, %s95
      %s98 = sphi 0, %s97
      %s112 = sphi 0, %s98
      %s116 = sphi 0, %s116
      %s118 = sphi 0, %s116
      %s119 = sphi 0, %s118
      %s133 = sphi 0, %s119
      %s137 = sphi 0, %s137
      %s139 = sphi 0, %s137
      %s140 = sphi 0, %s139
      %s154 = sphi 0, %s140
      %s158 = sphi 0, %s158
      %s160 = sphi 0, %s158
      %s161 = sphi 0, %s160
      %s175 = sphi 0, %s161
      %s179 = sphi 0, %s179
      %s181 = sphi 0, %s179
      %s182 = sphi 0, %s181
      %s196 = sphi 0, %s182
      %s200 = sphi 0, %s200
      %s202 = sphi 0, %s200
      %s203 = sphi 0, %s202
      %s217 = sphi 0, %s203
      %s221 = sphi 0, %s221
      %s223 = sphi 0, %s221
      %s224 = sphi 0, %s223
      %s238 = sphi 0, %s224
      %s244 = sphi 0, %s246
      %s247 = sphi 0, %s244
      %s248 = sphi 0, %s247
      %s264 = sphi 0, %s248
    $region4: #{tpu_custom_call.1} parent=1 // loop_header_branch
      %22 = sbr.rel (%p20) target = $region8
    $region5: #{tpu_custom_call.1} parent=1 // loop_body
      %s24 = ssub.s32 %s19, 1
      %s25 = ssub.s32 %s19, 2
      %s26 = sadd.s32 %s19, 1
      %s27 = ssub.s32 %s19, %s26
      %p28 = scmp.eq.s32.totalorder %s27, 0
      %s30 = sadd.s32 %s29, 1
      %s31 = scalar_select %p28, %s29, %s30
      %p34 = pneg %p28
      %p35 = scmp.eq.s32.totalorder %s19, 1
      %p36 = por %p34, %p35
      %p37 = scmp.ne.s32.totalorder %s29, %s32
      %p38 = scmp.eq.s32.totalorder %s19, 0
      %p39 = por %p37, %p38
      %p40 = scmp.ne.s32.totalorder %s29, %s32
      %p41 = scmp.eq.s32.totalorder %s24, 1
      %p42 = por %p40, %p41
      %p43 = scmp.ne.s32.totalorder %s32, %s33
      %p44 = scmp.eq.s32.totalorder %s24, 0
      %p45 = por %p43, %p44
      %p46 = scmp.ne.s32.totalorder %s32, %s33
      %p47 = scmp.eq.s32.totalorder %s25, 1
      %p48 = por %p46, %p47
      %p50 = scmp.ne.s32.totalorder %s33, %s49
      %p51 = scmp.eq.s32.totalorder %s25, 0
      %p52 = por %p50, %p51
      %s54 = sadd.s32 %s53, 1
      %p57 = scmp.eq.s32.totalorder %s19, 1
      %p58 = scmp.ne.s32.totalorder %s53, %s55
      %p59 = scmp.eq.s32.totalorder %s19, 0
      %p60 = por %p58, %p59
      %p61 = scmp.ne.s32.totalorder %s53, %s55
      %p62 = scmp.eq.s32.totalorder %s24, 1
      %p63 = por %p61, %p62
      %p64 = scmp.ne.s32.totalorder %s55, %s56
      %p65 = scmp.eq.s32.totalorder %s24, 0
      %p66 = por %p64, %p65
      %p67 = scmp.ne.s32.totalorder %s55, %s56
      %p68 = scmp.eq.s32.totalorder %s25, 1
      %p69 = por %p67, %p68
      %p71 = scmp.ne.s32.totalorder %s56, %s70
      %p72 = scmp.eq.s32.totalorder %s25, 0
      %p73 = por %p71, %p72
      %s75 = sadd.s32 %s74, 1
      %p78 = scmp.eq.s32.totalorder %s19, 1
      %p79 = scmp.ne.s32.totalorder %s74, %s76
      %p80 = scmp.eq.s32.totalorder %s19, 0
      %p81 = por %p79, %p80
      %p82 = scmp.ne.s32.totalorder %s74, %s76
      %p83 = scmp.eq.s32.totalorder %s24, 1
      %p84 = por %p82, %p83
      %p85 = scmp.ne.s32.totalorder %s76, %s77
      %p86 = scmp.eq.s32.totalorder %s24, 0
      %p87 = por %p85, %p86
      %p88 = scmp.ne.s32.totalorder %s76, %s77
      %p89 = scmp.eq.s32.totalorder %s25, 1
      %p90 = por %p88, %p89
      %p92 = scmp.ne.s32.totalorder %s77, %s91
      %p93 = scmp.eq.s32.totalorder %s25, 0
      %p94 = por %p92, %p93
      %s96 = sadd.s32 %s95, 1
      %p99 = scmp.eq.s32.totalorder %s19, 1
      %p100 = scmp.ne.s32.totalorder %s95, %s97
      %p101 = scmp.eq.s32.totalorder %s19, 0
      %p102 = por %p100, %p101
      %p103 = scmp.ne.s32.totalorder %s95, %s97
      %p104 = scmp.eq.s32.totalorder %s24, 1
      %p105 = por %p103, %p104
      %p106 = scmp.ne.s32.totalorder %s97, %s98
      %p107 = scmp.eq.s32.totalorder %s24, 0
      %p108 = por %p106, %p107
      %p109 = scmp.ne.s32.totalorder %s97, %s98
      %p110 = scmp.eq.s32.totalorder %s25, 1
      %p111 = por %p109, %p110
      %p113 = scmp.ne.s32.totalorder %s98, %s112
      %p114 = scmp.eq.s32.totalorder %s25, 0
      %p115 = por %p113, %p114
      %s117 = sadd.s32 %s116, 1
      %p120 = scmp.eq.s32.totalorder %s19, 1
      %p121 = scmp.ne.s32.totalorder %s116, %s118
      %p122 = scmp.eq.s32.totalorder %s19, 0
      %p123 = por %p121, %p122
      %p124 = scmp.ne.s32.totalorder %s116, %s118
      %p125 = scmp.eq.s32.totalorder %s24, 1
      %p126 = por %p124, %p125
      %p127 = scmp.ne.s32.totalorder %s118, %s119
      %p128 = scmp.eq.s32.totalorder %s24, 0
      %p129 = por %p127, %p128
      %p130 = scmp.ne.s32.totalorder %s118, %s119
      %p131 = scmp.eq.s32.totalorder %s25, 1
      %p132 = por %p130, %p131
      %p134 = scmp.ne.s32.totalorder %s119, %s133
      %p135 = scmp.eq.s32.totalorder %s25, 0
      %p136 = por %p134, %p135
      %s138 = sadd.s32 %s137, 1
      %p141 = scmp.eq.s32.totalorder %s19, 1
      %p142 = scmp.ne.s32.totalorder %s137, %s139
      %p143 = scmp.eq.s32.totalorder %s19, 0
      %p144 = por %p142, %p143
      %p145 = scmp.ne.s32.totalorder %s137, %s139
      %p146 = scmp.eq.s32.totalorder %s24, 1
      %p147 = por %p145, %p146
      %p148 = scmp.ne.s32.totalorder %s139, %s140
      %p149 = scmp.eq.s32.totalorder %s24, 0
      %p150 = por %p148, %p149
      %p151 = scmp.ne.s32.totalorder %s139, %s140
      %p152 = scmp.eq.s32.totalorder %s25, 1
      %p153 = por %p151, %p152
      %p155 = scmp.ne.s32.totalorder %s140, %s154
      %p156 = scmp.eq.s32.totalorder %s25, 0
      %p157 = por %p155, %p156
      %s159 = sadd.s32 %s158, 1
      %p162 = scmp.eq.s32.totalorder %s19, 1
      %p163 = scmp.ne.s32.totalorder %s158, %s160
      %p164 = scmp.eq.s32.totalorder %s19, 0
      %p165 = por %p163, %p164
      %p166 = scmp.ne.s32.totalorder %s158, %s160
      %p167 = scmp.eq.s32.totalorder %s24, 1
      %p168 = por %p166, %p167
      %p169 = scmp.ne.s32.totalorder %s160, %s161
      %p170 = scmp.eq.s32.totalorder %s24, 0
      %p171 = por %p169, %p170
      %p172 = scmp.ne.s32.totalorder %s160, %s161
      %p173 = scmp.eq.s32.totalorder %s25, 1
      %p174 = por %p172, %p173
      %p176 = scmp.ne.s32.totalorder %s161, %s175
      %p177 = scmp.eq.s32.totalorder %s25, 0
      %p178 = por %p176, %p177
      %s180 = sadd.s32 %s179, 1
      %p183 = scmp.eq.s32.totalorder %s19, 1
      %p184 = scmp.ne.s32.totalorder %s179, %s181
      %p185 = scmp.eq.s32.totalorder %s19, 0
      %p186 = por %p184, %p185
      %p187 = scmp.ne.s32.totalorder %s179, %s181
      %p188 = scmp.eq.s32.totalorder %s24, 1
      %p189 = por %p187, %p188
      %p190 = scmp.ne.s32.totalorder %s181, %s182
      %p191 = scmp.eq.s32.totalorder %s24, 0
      %p192 = por %p190, %p191
      %p193 = scmp.ne.s32.totalorder %s181, %s182
      %p194 = scmp.eq.s32.totalorder %s25, 1
      %p195 = por %p193, %p194
      %p197 = scmp.ne.s32.totalorder %s182, %s196
      %p198 = scmp.eq.s32.totalorder %s25, 0
      %p199 = por %p197, %p198
      %s201 = sadd.s32 %s200, 1
      %p204 = scmp.eq.s32.totalorder %s19, 1
      %p205 = scmp.ne.s32.totalorder %s200, %s202
      %p206 = scmp.eq.s32.totalorder %s19, 0
      %p207 = por %p205, %p206
      %p208 = scmp.ne.s32.totalorder %s200, %s202
      %p209 = scmp.eq.s32.totalorder %s24, 1
      %p210 = por %p208, %p209
      %p211 = scmp.ne.s32.totalorder %s202, %s203
      %p212 = scmp.eq.s32.totalorder %s24, 0
      %p213 = por %p211, %p212
      %p214 = scmp.ne.s32.totalorder %s202, %s203
      %p215 = scmp.eq.s32.totalorder %s25, 1
      %p216 = por %p214, %p215
      %p218 = scmp.ne.s32.totalorder %s203, %s217
      %p219 = scmp.eq.s32.totalorder %s25, 0
      %p220 = por %p218, %p219
      %s222 = sadd.s32 %s221, 1
      %p225 = scmp.eq.s32.totalorder %s19, 1
      %p226 = scmp.ne.s32.totalorder %s221, %s223
      %p227 = scmp.eq.s32.totalorder %s19, 0
      %p228 = por %p226, %p227
      %p229 = scmp.ne.s32.totalorder %s221, %s223
      %p230 = scmp.eq.s32.totalorder %s24, 1
      %p231 = por %p229, %p230
      %p232 = scmp.ne.s32.totalorder %s223, %s224
      %p233 = scmp.eq.s32.totalorder %s24, 0
      %p234 = por %p232, %p233
      %p235 = scmp.ne.s32.totalorder %s223, %s224
      %p236 = scmp.eq.s32.totalorder %s25, 1
      %p237 = por %p235, %p236
      %p239 = scmp.ne.s32.totalorder %s224, %s238
      %p240 = scmp.eq.s32.totalorder %s25, 0
      %p241 = por %p239, %p240
      %s242 = ssub.s32 %s19, %s26
      %p243 = scmp.eq.s32.totalorder %s242, 0
      %s245 = sadd.s32 %s244, 1
      %s246 = scalar_select %p243, %s244, %s245
      %p249 = pneg %p243
      %p250 = scmp.eq.s32.totalorder %s19, 1
      %p251 = por %p249, %p250
      %p252 = scmp.ne.s32.totalorder %s244, %s247
      %p253 = scmp.eq.s32.totalorder %s19, 0
      %p254 = por %p252, %p253
      %p255 = scmp.ne.s32.totalorder %s244, %s247
      %p256 = scmp.eq.s32.totalorder %s24, 1
      %p257 = por %p255, %p256
      %p258 = scmp.ne.s32.totalorder %s247, %s248
      %p259 = scmp.eq.s32.totalorder %s24, 0
      %p260 = por %p258, %p259
      %p261 = scmp.ne.s32.totalorder %s247, %s248
      %p262 = scmp.eq.s32.totalorder %s25, 1
      %p263 = por %p261, %p262
      %p265 = scmp.ne.s32.totalorder %s248, %s264
      %p266 = scmp.eq.s32.totalorder %s25, 0
      %p267 = por %p265, %p266
      %p268 = scmp.le.s32.totalorder 1, %s19
      %p269 = scmp.lt.s32.totalorder %s19, 3
      %p270 = pnand %p268, %p269
      %p271 = pneg %p270
      // Predicated region
      $region9: #{tpu_custom_call.1} parent=5 // pred_check
        _
      $region10: #{tpu_custom_call.1} parent=5 // pred_check_branch
        %273 = sbr.rel (%p270) target = $region12
      $region11: #{tpu_custom_call.1} parent=5 // pred_region
        %s274 = ssub.s32 %s19, 1
        // Predicated region
        $region13: #{tpu_custom_call.1} parent=11 // pred_check
          %p275 = pneg %p66
        $region14: #{tpu_custom_call.1} parent=11 // pred_check_branch
          %277 = sbr.rel (%p275) target = $region16
        $region15: #{tpu_custom_call.1} parent=11 // pred_region
          _
        $region16: #{tpu_custom_call.1} parent=11 // pred_fallthru
          _
        // Predicated region
        $region17: #{tpu_custom_call.1} parent=11 // pred_check
          %p278 = pneg %p87
        $region18: #{tpu_custom_call.1} parent=11 // pred_check_branch
          %280 = sbr.rel (%p278) target = $region20
        $region19: #{tpu_custom_call.1} parent=11 // pred_region
          _
        $region20: #{tpu_custom_call.1} parent=11 // pred_fallthru
          _
        // Predicated region
        $region21: #{tpu_custom_call.1} parent=11 // pred_check
          %p281 = pneg %p108
        $region22: #{tpu_custom_call.1} parent=11 // pred_check_branch
          %283 = sbr.rel (%p281) target = $region24
        $region23: #{tpu_custom_call.1} parent=11 // pred_region
          _
        $region24: #{tpu_custom_call.1} parent=11 // pred_fallthru
          _
        // Predicated region
        $region25: #{tpu_custom_call.1} parent=11 // pred_check
          %p284 = pneg %p129
        $region26: #{tpu_custom_call.1} parent=11 // pred_check_branch
          %286 = sbr.rel (%p284) target = $region28
        $region27: #{tpu_custom_call.1} parent=11 // pred_region
          _
        $region28: #{tpu_custom_call.1} parent=11 // pred_fallthru
          _
        // Predicated region
        $region29: #{tpu_custom_call.1} parent=11 // pred_check
          %p287 = pneg %p150
        $region30: #{tpu_custom_call.1} parent=11 // pred_check_branch
          %289 = sbr.rel (%p287) target = $region32
        $region31: #{tpu_custom_call.1} parent=11 // pred_region
          _
        $region32: #{tpu_custom_call.1} parent=11 // pred_fallthru
          _
        // Predicated region
        $region33: #{tpu_custom_call.1} parent=11 // pred_check
          %p290 = pneg %p171
        $region34: #{tpu_custom_call.1} parent=11 // pred_check_branch
          %292 = sbr.rel (%p290) target = $region36
        $region35: #{tpu_custom_call.1} parent=11 // pred_region
          _
        $region36: #{tpu_custom_call.1} parent=11 // pred_fallthru
          _
        // Predicated region
        $region37: #{tpu_custom_call.1} parent=11 // pred_check
          %p293 = pneg %p192
        $region38: #{tpu_custom_call.1} parent=11 // pred_check_branch
          %295 = sbr.rel (%p293) target = $region40
        $region39: #{tpu_custom_call.1} parent=11 // pred_region
          _
        $region40: #{tpu_custom_call.1} parent=11 // pred_fallthru
          _
        // Predicated region
        $region41: #{tpu_custom_call.1} parent=11 // pred_check
          %p296 = pneg %p213
        $region42: #{tpu_custom_call.1} parent=11 // pred_check_branch
          %298 = sbr.rel (%p296) target = $region44
        $region43: #{tpu_custom_call.1} parent=11 // pred_region
          _
        $region44: #{tpu_custom_call.1} parent=11 // pred_fallthru
          _
        // Predicated region
        $region45: #{tpu_custom_call.1} parent=11 // pred_check
          %p299 = pneg %p234
        $region46: #{tpu_custom_call.1} parent=11 // pred_check_branch
          %301 = sbr.rel (%p299) target = $region48
        $region47: #{tpu_custom_call.1} parent=11 // pred_region
          _
        $region48: #{tpu_custom_call.1} parent=11 // pred_fallthru
          _
      $region12: #{tpu_custom_call.1} parent=5 // pred_fallthru
        _
      %p302 = scmp.lt.s32.totalorder %s19, 2
      // Predicated region
      $region49: #{tpu_custom_call.1} parent=5 // pred_check
        %p303 = pneg %p302
      $region50: #{tpu_custom_call.1} parent=5 // pred_check_branch
        %305 = sbr.rel (%p303) target = $region52
      $region51: #{tpu_custom_call.1} parent=5 // pred_region
        // Predicated region
        $region53: #{tpu_custom_call.1} parent=51 // pred_check
          %p306 = pneg %p39
        $region54: #{tpu_custom_call.1} parent=51 // pred_check_branch
          %308 = sbr.rel (%p306) target = $region56
        $region55: #{tpu_custom_call.1} parent=51 // pred_region
          %p309 = scmp.lt.s32.totalorder %s19, 1
          %s310 = scalar_select %p309, %s19, 1
          %s311 = smul.addr %s310, 2
          %s312 = smul.addr %s311, 2
          %s313 = scalar_lea.vmem %s0, %s312
        $region56: #{tpu_custom_call.1} parent=51 // pred_fallthru
          _
      $region52: #{tpu_custom_call.1} parent=5 // pred_fallthru
        _
      %p314 = scmp.le.s32.totalorder 1, %s19
      %p315 = scmp.lt.s32.totalorder %s19, 3
      %p316 = pnand %p314, %p315
      %p317 = pneg %p316
      // Predicated region
      $region57: #{tpu_custom_call.1} parent=5 // pred_check
        _
      $region58: #{tpu_custom_call.1} parent=5 // pred_check_branch
        %319 = sbr.rel (%p316) target = $region60
      $region59: #{tpu_custom_call.1} parent=5 // pred_region
        %s320 = ssub.s32 %s19, 1
        %p321 = scmp.lt.s32.totalorder %s24, 1
        %s322 = scalar_select %p321, %s24, 1
        %s323 = smul.addr %s322, 2
        %s324 = smul.addr %s323, 2
        %s325 = scalar_lea.vmem %s0, %s324
        %p326 = pneg %p45
        %p327 = pneg %p42
        %p328 = pneg %p66
        %p329 = pneg %p63
        %p330 = pneg %p87
        %p331 = pneg %p84
        %p332 = pneg %p108
        %p333 = pneg %p105
        %p334 = pneg %p129
        %p335 = pneg %p126
        %p336 = pneg %p150
        %p337 = pneg %p147
        %p338 = pneg %p171
        %p339 = pneg %p168
        %p340 = pneg %p192
        %p341 = pneg %p189
        %p342 = pneg %p213
        %p343 = pneg %p210
        %p344 = pneg %p234
        %p345 = pneg %p231
        %p346 = pneg %p260
        %p347 = pneg %p257
        %s348 = sand.u32 %s247, 1
        %s349 = scalar_lea.sflag [#allocation3], %s348
        %s350 = sand.u32 %s247, 1
        %s351 = smul.addr %s350, 4
        %s352 = scalar_lea.vmem [#allocation2], %s351
        %p353 = scmp.lt.s32.totalorder %s24, 1
        %s354 = scalar_select %p353, %s24, 1
        %s355 = smul.addr %s354, 2
        %s356 = smul.addr %s355, 2
        %s357 = scalar_lea.vmem %s0, %s356
        %v359 = vld [vmem:[%s1] sm:$0xf]
        %v360 = vld [vmem:[%s3] sm:$0x3]
        %v361 = vld [vmem:[%s4] sm:$0x3]
        %v362 = vld [vmem:[%s2] sm:$0xff]
        %v363 = vld [vmem:[%s5] sm:$0xf]
        %v364 = vld [vmem:[%s6] sm:$0xf]
        %v365 = vld [vmem:[%s6 + $0x4] sm:$0xf]
        %v366 = vld [vmem:[%s6 + $0x8] sm:$0xf]
        %v367 = vld [vmem:[%s6 + $0xc] sm:$0xf]
        %v368 = vld [vmem:[%s6 + $0x10] sm:$0xf]
        %v369 = vld [vmem:[%s6 + $0x14] sm:$0xf]
        %v370 = vld [vmem:[%s6 + $0x18] sm:$0xf]
        %v371 = vld [vmem:[%s6 + $0x1c] sm:$0xf]
        %v372 = vld [vmem:[%s6 + $0x20] sm:$0xf]
        %v373 = vld [vmem:[%s6 + $0x24] sm:$0xf]
        %v374 = vld [vmem:[%s6 + $0x28] sm:$0xf]
        %v375 = vld [vmem:[%s6 + $0x2c] sm:$0xf]
        %v376 = vld [vmem:[%s6 + $0x30] sm:$0xf]
        %v377 = vld [vmem:[%s6 + $0x34] sm:$0xf]
        %v378 = vld [vmem:[%s6 + $0x38] sm:$0xf]
        %v379 = vld [vmem:[%s6 + $0x3c] sm:$0xf]
        %v380 = vld [vmem:[%s6 + $0x40] sm:$0xf]
        %v381 = vld [vmem:[%s6 + $0x44] sm:$0xf]
        %v382 = vld [vmem:[%s6 + $0x48] sm:$0xf]
        %v383 = vld [vmem:[%s6 + $0x4c] sm:$0xf]
        %v384 = vld [vmem:[%s6 + $0x50] sm:$0xf]
        %v385 = vld [vmem:[%s6 + $0x54] sm:$0xf]
        %v386 = vld [vmem:[%s6 + $0x58] sm:$0xf]
        %v387 = vld [vmem:[%s6 + $0x5c] sm:$0xf]
        %v388 = vld [vmem:[%s6 + $0x60] sm:$0xf]
        %v389 = vld [vmem:[%s6 + $0x64] sm:$0xf]
        %v390 = vld [vmem:[%s6 + $0x68] sm:$0xf]
        %v391 = vld [vmem:[%s6 + $0x6c] sm:$0xf]
        %v392 = vld [vmem:[%s6 + $0x70] sm:$0xf]
        %v393 = vld [vmem:[%s6 + $0x74] sm:$0xf]
        %v394 = vld [vmem:[%s6 + $0x78] sm:$0xf]
        %v395 = vld [vmem:[%s6 + $0x7c] sm:$0xf]
        %v396 = vld [vmem:[%s7] sm:$0xf]
        %v397 = vld [vmem:[%s7 + $0x4] sm:$0xf]
        %v398 = vld [vmem:[%s7 + $0x8] sm:$0xf]
        %v399 = vld [vmem:[%s7 + $0xc] sm:$0xf]
        %v400 = vld [vmem:[%s7 + $0x10] sm:$0xf]
        %v401 = vld [vmem:[%s7 + $0x14] sm:$0xf]
        %v402 = vld [vmem:[%s7 + $0x18] sm:$0xf]
        %v403 = vld [vmem:[%s7 + $0x1c] sm:$0xf]
        %v404 = vld [vmem:[%s7 + $0x20] sm:$0xf]
        %v405 = vld [vmem:[%s7 + $0x24] sm:$0xf]
        %v406 = vld [vmem:[%s7 + $0x28] sm:$0xf]
        %v407 = vld [vmem:[%s7 + $0x2c] sm:$0xf]
        %v408 = vld [vmem:[%s7 + $0x30] sm:$0xf]
        %v409 = vld [vmem:[%s7 + $0x34] sm:$0xf]
        %v410 = vld [vmem:[%s7 + $0x38] sm:$0xf]
        %v411 = vld [vmem:[%s7 + $0x3c] sm:$0xf]
        %v412 = vld [vmem:[%s7 + $0x40] sm:$0xf]
        %v413 = vld [vmem:[%s7 + $0x44] sm:$0xf]
        %v414 = vld [vmem:[%s7 + $0x48] sm:$0xf]
        %v415 = vld [vmem:[%s7 + $0x4c] sm:$0xf]
        %v416 = vld [vmem:[%s7 + $0x50] sm:$0xf]
        %v417 = vld [vmem:[%s7 + $0x54] sm:$0xf]
        %v418 = vld [vmem:[%s7 + $0x58] sm:$0xf]
        %v419 = vld [vmem:[%s7 + $0x5c] sm:$0xf]
        %v420 = vld [vmem:[%s7 + $0x60] sm:$0xf]
        %v421 = vld [vmem:[%s7 + $0x64] sm:$0xf]
        %v422 = vld [vmem:[%s7 + $0x68] sm:$0xf]
        %v423 = vld [vmem:[%s7 + $0x6c] sm:$0xf]
        %v424 = vld [vmem:[%s7 + $0x70] sm:$0xf]
        %v425 = vld [vmem:[%s7 + $0x74] sm:$0xf]
        %v426 = vld [vmem:[%s7 + $0x78] sm:$0xf]
        %v427 = vld [vmem:[%s7 + $0x7c] sm:$0xf]
        %v428 = vld [vmem:[%s8] sm:$0xff]
        %v429 = vld [vmem:[%s8 + $0x8] sm:$0xff]
        %v430 = vld [vmem:[%s9] sm:$0xff]
        %v431 = vld [vmem:[%s9 + $0x8] sm:$0xff]
        %v432 = vld [vmem:[%s357] sm:$0xf]
        %v435 = vunpack.c.l.s4 1983009808
        %v436 = vunpack.c.0.s8 %v435
        %v437 = vlaneseq
        %v438 = vshrl.u32 %v437, 7
        %v439 = vsub.s32 %v436, %v438
        %v440 = vrot.slane %v432, %v439
        %v441 = vcombine.high %v440, %v440
        %v476 = vunpack.c.l.b16 %v364
        %v477 = vunpack.c.l.b16 %v365
        %v478 = vunpack.c.l.b16 %v366
        %v479 = vunpack.c.l.b16 %v367
        %v480 = vunpack.c.l.b16 %v368
        %v481 = vunpack.c.l.b16 %v369
        %v482 = vunpack.c.l.b16 %v370
        %v483 = vunpack.c.l.b16 %v371
        %v484 = vunpack.c.l.b16 %v372
        %v485 = vunpack.c.l.b16 %v373
        %v486 = vunpack.c.l.b16 %v374
        %v487 = vunpack.c.l.b16 %v375
        %v488 = vunpack.c.l.b16 %v376
        %v489 = vunpack.c.l.b16 %v377
        %v490 = vunpack.c.l.b16 %v378
        %v491 = vunpack.c.l.b16 %v379
        %v492 = vunpack.c.l.b16 %v380
        %v493 = vunpack.c.l.b16 %v381
        %v494 = vunpack.c.l.b16 %v382
        %v495 = vunpack.c.l.b16 %v383
        %v496 = vunpack.c.l.b16 %v384
        %v497 = vunpack.c.l.b16 %v385
        %v498 = vunpack.c.l.b16 %v386
        %v499 = vunpack.c.l.b16 %v387
        %v500 = vunpack.c.l.b16 %v388
        %v501 = vunpack.c.l.b16 %v389
        %v502 = vunpack.c.l.b16 %v390
        %v503 = vunpack.c.l.b16 %v391
        %v504 = vunpack.c.l.b16 %v392
        %v505 = vunpack.c.l.b16 %v393
        %v506 = vunpack.c.l.b16 %v394
        %v507 = vunpack.c.l.b16 %v395
        %v508 = vpack.c.b16 %v477, %v476
        %v509 = vpack.c.b16 %v479, %v478
        %v510 = vpack.c.b16 %v481, %v480
        %v511 = vpack.c.b16 %v483, %v482
        %v512 = vpack.c.b16 %v485, %v484
        %v513 = vpack.c.b16 %v487, %v486
        %v514 = vpack.c.b16 %v489, %v488
        %v515 = vpack.c.b16 %v491, %v490
        %v516 = vpack.c.b16 %v493, %v492
        %v517 = vpack.c.b16 %v495, %v494
        %v518 = vpack.c.b16 %v497, %v496
        %v519 = vpack.c.b16 %v499, %v498
        %v520 = vpack.c.b16 %v501, %v500
        %v521 = vpack.c.b16 %v503, %v502
        %v522 = vpack.c.b16 %v505, %v504
        %v523 = vpack.c.b16 %v507, %v506
        %540 = vmatprep.subr.bf16.mxu0 0
        %541 = vmatpush1.bf16.msra.mxu0 %v515
        %542 = vmatprep.subr.bf16.mxu0 0
        %543 = vmatpush1.bf16.msra.mxu0 %v514
        %544 = vmatprep.subr.bf16.mxu0 0
        %545 = vmatpush1.bf16.msra.mxu0 %v513
        %546 = vmatprep.subr.bf16.mxu0 0
        %547 = vmatpush1.bf16.msra.mxu0 %v512
        %548 = vmatprep.subr.bf16.mxu0 0
        %549 = vmatpush1.bf16.msra.mxu0 %v511
        %550 = vmatprep.subr.bf16.mxu0 0
        %551 = vmatpush1.bf16.msra.mxu0 %v510
        %552 = vmatprep.subr.bf16.mxu0 0
        %553 = vmatpush1.bf16.msra.mxu0 %v509
        %554 = vmatprep.subr.bf16.mxu0 0
        %555 = vmatpush1.bf16.msra.mxu0 %v508
        %556 = vmatprep.subr.bf16.mxu0 0
        %557 = vmatpush2.bf16.msra.mxu0 %v523
        %558 = vmatprep.subr.bf16.mxu0 0
        %559 = vmatpush2.bf16.msra.mxu0 %v522
        %560 = vmatprep.subr.bf16.mxu0 0
        %561 = vmatpush2.bf16.msra.mxu0 %v521
        %562 = vmatprep.subr.bf16.mxu0 0
        %563 = vmatpush2.bf16.msra.mxu0 %v520
        %564 = vmatprep.subr.bf16.mxu0 0
        %565 = vmatpush2.bf16.msra.mxu0 %v519
        %566 = vmatprep.subr.bf16.mxu0 0
        %567 = vmatpush2.bf16.msra.mxu0 %v518
        %568 = vmatprep.subr.bf16.mxu0 0
        %569 = vmatpush2.bf16.msra.mxu0 %v517
        %570 = vmatprep.subr.bf16.mxu0 0
        %571 = vmatpush2.bf16.msra.mxu0 %v516
        %572 = vmatprep.mubr.bf16.mxu0 %v441
        %573 = vmatmul.mubr.bf16.gmra.mxu0 %v440
        %v574 = vpop.f32.mrf.mxu0
        %v575 = vadd.f32 0.0, %v574
        %v576 = vpop.f32.mrf.mxu0
        %v577 = vpop.f32.mrf.mxu0
        %v578 = vpop.f32.mrf.mxu0
        %579 = vdwg.mxu0
        %v580 = vmul.f32 %v575, 0.0625
        %v581 = vpack.c.bf16 %v580, %v580
        %vm582 = vcmask 31744
        %v584 = vsel %vm582, %v359, 0
        %vm586 = vcmask 1041408
        %v588 = vsel %vm586, %v581, 0
        %590 = vmatprep.subr.bf16.mxu0 0
        %591 = vmatpush1.bf16.msra.mxu0 0
        %592 = vmatprep.subr.bf16.mxu0 0
        %593 = vmatpush1.bf16.msra.mxu0 0
        %594 = vmatprep.subr.bf16.mxu0 0
        %595 = vmatpush1.bf16.msra.mxu0 0
        %596 = vmatprep.subr.bf16.mxu0 0
        %597 = vmatpush1.bf16.msra.mxu0 0
        %598 = vmatprep.subr.bf16.mxu0 0
        %599 = vmatpush1.bf16.msra.mxu0 0
        %600 = vmatprep.subr.bf16.mxu0 0
        %601 = vmatpush1.bf16.msra.mxu0 0
        %602 = vmatprep.subr.bf16.mxu0 0
        %603 = vmatpush1.bf16.msra.mxu0 0
        %604 = vmatprep.subr.bf16.mxu0 0
        %605 = vmatpush1.bf16.msra.mxu0 %v588
        %606 = vmatprep.subr.bf16.mxu0 0
        %607 = vmatpush2.bf16.msra.mxu0 0
        %608 = vmatprep.subr.bf16.mxu0 0
        %609 = vmatpush2.bf16.msra.mxu0 0
        %610 = vmatprep.subr.bf16.mxu0 0
        %611 = vmatpush2.bf16.msra.mxu0 0
        %612 = vmatprep.subr.bf16.mxu0 0
        %613 = vmatpush2.bf16.msra.mxu0 0
        %614 = vmatprep.subr.bf16.mxu0 0
        %615 = vmatpush2.bf16.msra.mxu0 0
        %616 = vmatprep.subr.bf16.mxu0 0
        %617 = vmatpush2.bf16.msra.mxu0 0
        %618 = vmatprep.subr.bf16.mxu0 0
        %619 = vmatpush2.bf16.msra.mxu0 0
        %620 = vmatprep.subr.bf16.mxu0 0
        %621 = vmatpush2.bf16.msra.mxu0 0
        %622 = vmatprep.mubr.bf16.mxu0 0
        %623 = vmatmul.mubr.bf16.gmra.mxu0 %v584
        %v624 = vpop.f32.mrf.mxu0
        %v625 = vadd.f32 0.0, %v624
        %v626 = vpop.f32.mrf.mxu0
        %v627 = vpop.f32.mrf.mxu0
        %v628 = vpop.f32.mrf.mxu0
        %629 = vdwg.mxu0
        %631 = vset.pattern.permute.xlu0 0
        %632 = vperm.xlu0 %631, %v362
        %v633 = vpop.permute.xlu0 %632
        %v635 = vmul.f32 %v625, %v633
        %636 = vset.pattern.permute.xlu0 1
        %637 = vperm.xlu0 %636, %v362
        %v638 = vpop.permute.xlu0 %637
        %v640 = vadd.f32 %v635, %v638
        %v641 = vmax.f32 %v640, 0.0
        %v642 = vpack.c.bf16 %v641, %v641
        %644 = vset.pattern.permute.xlu0 0
        %645 = vperm.xlu0 %644, %v363
        %v646 = vpop.permute.xlu0 %645
        %vm648 = vcmask 64512
        %v650 = vsel %vm648, %v360, 0
        %vm652 = vcmask 1043456
        %v654 = vsel %vm652, %v642, 0
        %656 = vmatprep.subr.bf16.mxu0 0
        %657 = vmatpush1.bf16.msra.mxu0 0
        %658 = vmatprep.subr.bf16.mxu0 0
        %659 = vmatpush1.bf16.msra.mxu0 0
        %660 = vmatprep.subr.bf16.mxu0 0
        %661 = vmatpush1.bf16.msra.mxu0 0
        %662 = vmatprep.subr.bf16.mxu0 0
        %663 = vmatpush1.bf16.msra.mxu0 0
        %664 = vmatprep.subr.bf16.mxu0 0
        %665 = vmatpush1.bf16.msra.mxu0 0
        %666 = vmatprep.subr.bf16.mxu0 0
        %667 = vmatpush1.bf16.msra.mxu0 0
        %668 = vmatprep.subr.bf16.mxu0 0
        %669 = vmatpush1.bf16.msra.mxu0 0
        %670 = vmatprep.subr.bf16.mxu0 0
        %671 = vmatpush1.bf16.msra.mxu0 %v654
        %672 = vmatprep.subr.bf16.mxu0 0
        %673 = vmatpush2.bf16.msra.mxu0 0
        %674 = vmatprep.subr.bf16.mxu0 0
        %675 = vmatpush2.bf16.msra.mxu0 0
        %676 = vmatprep.subr.bf16.mxu0 0
        %677 = vmatpush2.bf16.msra.mxu0 0
        %678 = vmatprep.subr.bf16.mxu0 0
        %679 = vmatpush2.bf16.msra.mxu0 0
        %680 = vmatprep.subr.bf16.mxu0 0
        %681 = vmatpush2.bf16.msra.mxu0 0
        %682 = vmatprep.subr.bf16.mxu0 0
        %683 = vmatpush2.bf16.msra.mxu0 0
        %684 = vmatprep.subr.bf16.mxu0 0
        %685 = vmatpush2.bf16.msra.mxu0 0
        %686 = vmatprep.subr.bf16.mxu0 0
        %687 = vmatpush2.bf16.msra.mxu0 0
        %688 = vmatprep.mubr.bf16.mxu0 0
        %689 = vmatmul.mubr.bf16.gmra.mxu0 %v650
        %v690 = vpop.f32.mrf.mxu0
        %v691 = vadd.f32 %v646, %v690
        %v692 = vpop.f32.mrf.mxu0
        %v693 = vpop.f32.mrf.mxu0
        %v694 = vpop.f32.mrf.mxu0
        %695 = vdwg.mxu0
        %v696 = vsub.f32 0.0, %v691
        %v697 = vmul.f32 %v696, 1.442695
        %v698 = vpow.pop %v697
        %v699 = vadd.f32 %v698, 1.0
        %v700 = vrcp.pop %v699
        %v701 = vpack.c.bf16 %v700, %v700
        %v704 = vunpack.c.l.b16 %v428
        %v705 = vunpack.c.h.b16 %v428
        %v706 = vunpack.c.l.b16 %v429
        %v707 = vunpack.c.h.b16 %v429
        %v708 = vpack.c.b16 %v706, %v704
        %v709 = vpack.c.b16 %v707, %v705
        %vm712 = vcmask 130048
        %v714 = vsel %vm712, %v701, 0
        %716 = vmatprep.subr.bf16.mxu0 0
        %717 = vmatpush1.bf16.msra.mxu0 0
        %718 = vmatprep.subr.bf16.mxu0 0
        %719 = vmatpush1.bf16.msra.mxu0 0
        %720 = vmatprep.subr.bf16.mxu0 0
        %721 = vmatpush1.bf16.msra.mxu0 0
        %722 = vmatprep.subr.bf16.mxu0 0
        %723 = vmatpush1.bf16.msra.mxu0 0
        %724 = vmatprep.subr.bf16.mxu0 0
        %725 = vmatpush1.bf16.msra.mxu0 0
        %726 = vmatprep.subr.bf16.mxu0 0
        %727 = vmatpush1.bf16.msra.mxu0 0
        %728 = vmatprep.subr.bf16.mxu0 0
        %729 = vmatpush1.bf16.msra.mxu0 0
        %730 = vmatprep.subr.bf16.mxu0 %v709
        %731 = vmatpush1.bf16.msra.mxu0 %v708
        %732 = vmatprep.subr.bf16.mxu0 0
        %733 = vmatpush2.bf16.msra.mxu0 0
        %734 = vmatprep.subr.bf16.mxu0 0
        %735 = vmatpush2.bf16.msra.mxu0 0
        %736 = vmatprep.subr.bf16.mxu0 0
        %737 = vmatpush2.bf16.msra.mxu0 0
        %738 = vmatprep.subr.bf16.mxu0 0
        %739 = vmatpush2.bf16.msra.mxu0 0
        %740 = vmatprep.subr.bf16.mxu0 0
        %741 = vmatpush2.bf16.msra.mxu0 0
        %742 = vmatprep.subr.bf16.mxu0 0
        %743 = vmatpush2.bf16.msra.mxu0 0
        %744 = vmatprep.subr.bf16.mxu0 0
        %745 = vmatpush2.bf16.msra.mxu0 0
        %746 = vmatprep.subr.bf16.mxu0 0
        %747 = vmatpush2.bf16.msra.mxu0 0
        %748 = vmatprep.mubr.bf16.mxu0 0
        %749 = vmatmul.mubr.bf16.gmra.mxu0 %v714
        %v750 = vpop.f32.mrf.mxu0
        %v751 = vadd.f32 0.0, %v750
        %v752 = vpop.f32.mrf.mxu0
        %v753 = vadd.f32 0.0, %v752
        %v754 = vpop.f32.mrf.mxu0
        %v755 = vpop.f32.mrf.mxu0
        %756 = vdwg.mxu0
        %v789 = vunpack.c.l.b16 %v396
        %v790 = vunpack.c.l.b16 %v397
        %v791 = vunpack.c.l.b16 %v398
        %v792 = vunpack.c.l.b16 %v399
        %v793 = vunpack.c.l.b16 %v400
        %v794 = vunpack.c.l.b16 %v401
        %v795 = vunpack.c.l.b16 %v402
        %v796 = vunpack.c.l.b16 %v403
        %v797 = vunpack.c.l.b16 %v404
        %v798 = vunpack.c.l.b16 %v405
        %v799 = vunpack.c.l.b16 %v406
        %v800 = vunpack.c.l.b16 %v407
        %v801 = vunpack.c.l.b16 %v408
        %v802 = vunpack.c.l.b16 %v409
        %v803 = vunpack.c.l.b16 %v410
        %v804 = vunpack.c.l.b16 %v411
        %v805 = vunpack.c.l.b16 %v412
        %v806 = vunpack.c.l.b16 %v413
        %v807 = vunpack.c.l.b16 %v414
        %v808 = vunpack.c.l.b16 %v415
        %v809 = vunpack.c.l.b16 %v416
        %v810 = vunpack.c.l.b16 %v417
        %v811 = vunpack.c.l.b16 %v418
        %v812 = vunpack.c.l.b16 %v419
        %v813 = vunpack.c.l.b16 %v420
        %v814 = vunpack.c.l.b16 %v421
        %v815 = vunpack.c.l.b16 %v422
        %v816 = vunpack.c.l.b16 %v423
        %v817 = vunpack.c.l.b16 %v424
        %v818 = vunpack.c.l.b16 %v425
        %v819 = vunpack.c.l.b16 %v426
        %v820 = vunpack.c.l.b16 %v427
        %v821 = vpack.c.b16 %v790, %v789
        %v822 = vpack.c.b16 %v792, %v791
        %v823 = vpack.c.b16 %v794, %v793
        %v824 = vpack.c.b16 %v796, %v795
        %v825 = vpack.c.b16 %v798, %v797
        %v826 = vpack.c.b16 %v800, %v799
        %v827 = vpack.c.b16 %v802, %v801
        %v828 = vpack.c.b16 %v804, %v803
        %v829 = vpack.c.b16 %v806, %v805
        %v830 = vpack.c.b16 %v808, %v807
        %v831 = vpack.c.b16 %v810, %v809
        %v832 = vpack.c.b16 %v812, %v811
        %v833 = vpack.c.b16 %v814, %v813
        %v834 = vpack.c.b16 %v816, %v815
        %v835 = vpack.c.b16 %v818, %v817
        %v836 = vpack.c.b16 %v820, %v819
        %853 = vmatprep.subr.bf16.mxu0 0
        %854 = vmatpush1.bf16.msra.mxu0 %v828
        %855 = vmatprep.subr.bf16.mxu0 0
        %856 = vmatpush1.bf16.msra.mxu0 %v827
        %857 = vmatprep.subr.bf16.mxu0 0
        %858 = vmatpush1.bf16.msra.mxu0 %v826
        %859 = vmatprep.subr.bf16.mxu0 0
        %860 = vmatpush1.bf16.msra.mxu0 %v825
        %861 = vmatprep.subr.bf16.mxu0 0
        %862 = vmatpush1.bf16.msra.mxu0 %v824
        %863 = vmatprep.subr.bf16.mxu0 0
        %864 = vmatpush1.bf16.msra.mxu0 %v823
        %865 = vmatprep.subr.bf16.mxu0 0
        %866 = vmatpush1.bf16.msra.mxu0 %v822
        %867 = vmatprep.subr.bf16.mxu0 0
        %868 = vmatpush1.bf16.msra.mxu0 %v821
        %869 = vmatprep.subr.bf16.mxu0 0
        %870 = vmatpush2.bf16.msra.mxu0 %v836
        %871 = vmatprep.subr.bf16.mxu0 0
        %872 = vmatpush2.bf16.msra.mxu0 %v835
        %873 = vmatprep.subr.bf16.mxu0 0
        %874 = vmatpush2.bf16.msra.mxu0 %v834
        %875 = vmatprep.subr.bf16.mxu0 0
        %876 = vmatpush2.bf16.msra.mxu0 %v833
        %877 = vmatprep.subr.bf16.mxu0 0
        %878 = vmatpush2.bf16.msra.mxu0 %v832
        %879 = vmatprep.subr.bf16.mxu0 0
        %880 = vmatpush2.bf16.msra.mxu0 %v831
        %881 = vmatprep.subr.bf16.mxu0 0
        %882 = vmatpush2.bf16.msra.mxu0 %v830
        %883 = vmatprep.subr.bf16.mxu0 0
        %884 = vmatpush2.bf16.msra.mxu0 %v829
        %885 = vmatprep.mubr.bf16.mxu0 %v441
        %886 = vmatmul.mubr.bf16.gmra.mxu0 %v440
        %v887 = vpop.f32.mrf.mxu0
        %v888 = vadd.f32 0.0, %v887
        %v889 = vpop.f32.mrf.mxu0
        %v890 = vpop.f32.mrf.mxu0
        %v891 = vpop.f32.mrf.mxu0
        %892 = vdwg.mxu0
        %v893 = vmul.f32 %v888, 0.0625
        %v894 = vpack.c.bf16 %v893, %v893
        %v896 = vsel %vm586, %v894, 0
        %898 = vmatprep.subr.bf16.mxu0 0
        %899 = vmatpush1.bf16.msra.mxu0 0
        %900 = vmatprep.subr.bf16.mxu0 0
        %901 = vmatpush1.bf16.msra.mxu0 0
        %902 = vmatprep.subr.bf16.mxu0 0
        %903 = vmatpush1.bf16.msra.mxu0 0
        %904 = vmatprep.subr.bf16.mxu0 0
        %905 = vmatpush1.bf16.msra.mxu0 0
        %906 = vmatprep.subr.bf16.mxu0 0
        %907 = vmatpush1.bf16.msra.mxu0 0
        %908 = vmatprep.subr.bf16.mxu0 0
        %909 = vmatpush1.bf16.msra.mxu0 0
        %910 = vmatprep.subr.bf16.mxu0 0
        %911 = vmatpush1.bf16.msra.mxu0 0
        %912 = vmatprep.subr.bf16.mxu0 0
        %913 = vmatpush1.bf16.msra.mxu0 %v896
        %914 = vmatprep.subr.bf16.mxu0 0
        %915 = vmatpush2.bf16.msra.mxu0 0
        %916 = vmatprep.subr.bf16.mxu0 0
        %917 = vmatpush2.bf16.msra.mxu0 0
        %918 = vmatprep.subr.bf16.mxu0 0
        %919 = vmatpush2.bf16.msra.mxu0 0
        %920 = vmatprep.subr.bf16.mxu0 0
        %921 = vmatpush2.bf16.msra.mxu0 0
        %922 = vmatprep.subr.bf16.mxu0 0
        %923 = vmatpush2.bf16.msra.mxu0 0
        %924 = vmatprep.subr.bf16.mxu0 0
        %925 = vmatpush2.bf16.msra.mxu0 0
        %926 = vmatprep.subr.bf16.mxu0 0
        %927 = vmatpush2.bf16.msra.mxu0 0
        %928 = vmatprep.subr.bf16.mxu0 0
        %929 = vmatpush2.bf16.msra.mxu0 0
        %930 = vmatprep.mubr.bf16.mxu0 0
        %931 = vmatmul.mubr.bf16.gmra.mxu0 %v584
        %v932 = vpop.f32.mrf.mxu0
        %v933 = vadd.f32 0.0, %v932
        %v934 = vpop.f32.mrf.mxu0
        %v935 = vpop.f32.mrf.mxu0
        %v936 = vpop.f32.mrf.mxu0
        %937 = vdwg.mxu0
        %v938 = vmul.f32 %v933, %v633
        %v939 = vadd.f32 %v938, %v638
        %v940 = vmax.f32 %v939, 0.0
        %v941 = vpack.c.bf16 %v940, %v940
        %942 = vset.pattern.permute.xlu0 1
        %943 = vperm.xlu0 %942, %v363
        %v944 = vpop.permute.xlu0 %943
        %v947 = vsel %vm648, %v361, 0
        %v950 = vsel %vm652, %v941, 0
        %952 = vmatprep.subr.bf16.mxu0 0
        %953 = vmatpush1.bf16.msra.mxu0 0
        %954 = vmatprep.subr.bf16.mxu0 0
        %955 = vmatpush1.bf16.msra.mxu0 0
        %956 = vmatprep.subr.bf16.mxu0 0
        %957 = vmatpush1.bf16.msra.mxu0 0
        %958 = vmatprep.subr.bf16.mxu0 0
        %959 = vmatpush1.bf16.msra.mxu0 0
        %960 = vmatprep.subr.bf16.mxu0 0
        %961 = vmatpush1.bf16.msra.mxu0 0
        %962 = vmatprep.subr.bf16.mxu0 0
        %963 = vmatpush1.bf16.msra.mxu0 0
        %964 = vmatprep.subr.bf16.mxu0 0
        %965 = vmatpush1.bf16.msra.mxu0 0
        %966 = vmatprep.subr.bf16.mxu0 0
        %967 = vmatpush1.bf16.msra.mxu0 %v950
        %968 = vmatprep.subr.bf16.mxu0 0
        %969 = vmatpush2.bf16.msra.mxu0 0
        %970 = vmatprep.subr.bf16.mxu0 0
        %971 = vmatpush2.bf16.msra.mxu0 0
        %972 = vmatprep.subr.bf16.mxu0 0
        %973 = vmatpush2.bf16.msra.mxu0 0
        %974 = vmatprep.subr.bf16.mxu0 0
        %975 = vmatpush2.bf16.msra.mxu0 0
        %976 = vmatprep.subr.bf16.mxu0 0
        %977 = vmatpush2.bf16.msra.mxu0 0
        %978 = vmatprep.subr.bf16.mxu0 0
        %979 = vmatpush2.bf16.msra.mxu0 0
        %980 = vmatprep.subr.bf16.mxu0 0
        %981 = vmatpush2.bf16.msra.mxu0 0
        %982 = vmatprep.subr.bf16.mxu0 0
        %983 = vmatpush2.bf16.msra.mxu0 0
        %984 = vmatprep.mubr.bf16.mxu0 0
        %985 = vmatmul.mubr.bf16.gmra.mxu0 %v947
        %v986 = vpop.f32.mrf.mxu0
        %v987 = vadd.f32 %v944, %v986
        %v988 = vpop.f32.mrf.mxu0
        %v989 = vpop.f32.mrf.mxu0
        %v990 = vpop.f32.mrf.mxu0
        %991 = vdwg.mxu0
        %v992 = vsub.f32 0.0, %v987
        %v993 = vmul.f32 %v992, 1.442695
        %v994 = vpow.pop %v993
        %v995 = vadd.f32 %v994, 1.0
        %v996 = vrcp.pop %v995
        %v997 = vpack.c.bf16 %v996, %v996
        %v1000 = vunpack.c.l.b16 %v430
        %v1001 = vunpack.c.h.b16 %v430
        %v1002 = vunpack.c.l.b16 %v431
        %v1003 = vunpack.c.h.b16 %v431
        %v1004 = vpack.c.b16 %v1002, %v1000
        %v1005 = vpack.c.b16 %v1003, %v1001
        %v1009 = vsel %vm712, %v997, 0
        %1011 = vmatprep.subr.bf16.mxu0 0
        %1012 = vmatpush1.bf16.msra.mxu0 0
        %1013 = vmatprep.subr.bf16.mxu0 0
        %1014 = vmatpush1.bf16.msra.mxu0 0
        %1015 = vmatprep.subr.bf16.mxu0 0
        %1016 = vmatpush1.bf16.msra.mxu0 0
        %1017 = vmatprep.subr.bf16.mxu0 0
        %1018 = vmatpush1.bf16.msra.mxu0 0
        %1019 = vmatprep.subr.bf16.mxu0 0
        %1020 = vmatpush1.bf16.msra.mxu0 0
        %1021 = vmatprep.subr.bf16.mxu0 0
        %1022 = vmatpush1.bf16.msra.mxu0 0
        %1023 = vmatprep.subr.bf16.mxu0 0
        %1024 = vmatpush1.bf16.msra.mxu0 0
        %1025 = vmatprep.subr.bf16.mxu0 %v1005
        %1026 = vmatpush1.bf16.msra.mxu0 %v1004
        %1027 = vmatprep.subr.bf16.mxu0 0
        %1028 = vmatpush2.bf16.msra.mxu0 0
        %1029 = vmatprep.subr.bf16.mxu0 0
        %1030 = vmatpush2.bf16.msra.mxu0 0
        %1031 = vmatprep.subr.bf16.mxu0 0
        %1032 = vmatpush2.bf16.msra.mxu0 0
        %1033 = vmatprep.subr.bf16.mxu0 0
        %1034 = vmatpush2.bf16.msra.mxu0 0
        %1035 = vmatprep.subr.bf16.mxu0 0
        %1036 = vmatpush2.bf16.msra.mxu0 0
        %1037 = vmatprep.subr.bf16.mxu0 0
        %1038 = vmatpush2.bf16.msra.mxu0 0
        %1039 = vmatprep.subr.bf16.mxu0 0
        %1040 = vmatpush2.bf16.msra.mxu0 0
        %1041 = vmatprep.subr.bf16.mxu0 0
        %1042 = vmatpush2.bf16.msra.mxu0 0
        %1043 = vmatprep.mubr.bf16.mxu0 0
        %1044 = vmatmul.mubr.bf16.gmra.mxu0 %v1009
        %v1045 = vpop.f32.mrf.mxu0
        %v1046 = vadd.f32 0.0, %v1045
        %v1047 = vpop.f32.mrf.mxu0
        %v1048 = vadd.f32 0.0, %v1047
        %v1049 = vpop.f32.mrf.mxu0
        %v1050 = vpop.f32.mrf.mxu0
        %1051 = vdwg.mxu0
        %v1052 = vunpack.c.l.bf16 %v432
        %v1055 = vcombine.low %v751, %v753
        %v1057 = vmul.f32 %v1052, %v1055
        %v1060 = vcombine.low %v1046, %v1048
        %v1062 = vmul.f32 %v1057, %v1060
        %v1064 = vcombine.high %v1062, %v1062
        %v1066 = vpack.c.bf16 %v1062, %v1062
        %v1067 = vpack.c.bf16 %v1064, %v1064
        %v1070 = vcombine.low %v1066, %v1067
        %v1072 = vunpack.c.l.s4 1983009808
        %v1073 = vunpack.c.0.s8 %v1072
        %v1074 = vlaneseq
        %v1075 = vshrl.u32 %v1074, 7
        %v1076 = vsub.s32 %v1073, %v1075
        %v1077 = vrot.slane %v1070, %v1076
        %1079 = vst [vmem:[%s352] sm:$0xf] %v1077
        %s1080 = sand.u32 %s247, 1
        %s1081 = scalar_lea.sflag [#allocation3], %s1080
        %s1082 = sand.u32 %s247, 1
        %s1083 = smul.addr %s1082, 4
        %s1084 = scalar_lea.vmem [#allocation2], %s1083
        // Predicated region
        $region61: #{tpu_custom_call.1} parent=59 // pred_check
          %p1085 = pneg %p257
        $region62: #{tpu_custom_call.1} parent=59 // pred_check_branch
          %1087 = sbr.rel (%p1085) target = $region64
        $region63: #{tpu_custom_call.1} parent=59 // pred_region
          %s1089 = ssub.s32 64, 64
          %1090 = vsyncadd %s1081, %s1089
          %s1091 = smul.addr %s24, 2
          %s1092 = smul.addr %s1091, 32
          %s1093 = scalar_lea.hbm %s10, %s1092
          %s1095 = sshll.u32 %s1084, 4
          %s1096 = int_to_ptr.vmem [resolvable:$true] %s1095
          %1098 = dma.vmem_to_hbm [thread:$0]  %s1096, 64, %s1093, %s1081
        $region64: #{tpu_custom_call.1} parent=59 // pred_fallthru
          _
      $region60: #{tpu_custom_call.1} parent=5 // pred_fallthru
        _
      %p1099 = scmp.le.s32.totalorder 2, %s19
      // Predicated region
      $region65: #{tpu_custom_call.1} parent=5 // pred_check
        %p1100 = pneg %p1099
      $region66: #{tpu_custom_call.1} parent=5 // pred_check_branch
        %1102 = sbr.rel (%p1100) target = $region68
      $region67: #{tpu_custom_call.1} parent=5 // pred_region
        %s1103 = ssub.s32 %s19, 2
        // Predicated region
        $region69: #{tpu_custom_call.1} parent=67 // pred_check
          %p1104 = pneg %p263
        $region70: #{tpu_custom_call.1} parent=67 // pred_check_branch
          %1106 = sbr.rel (%p1104) target = $region72
        $region71: #{tpu_custom_call.1} parent=67 // pred_region
          %s1107 = sand.u32 %s248, 1
          %s1108 = scalar_lea.sflag [#allocation3], %s1107
          %s1109 = sand.u32 %s248, 1
          %s1110 = smul.addr %s1109, 4
          %s1111 = scalar_lea.vmem [#allocation2], %s1110
          %1112 = dma.done %s1108, 64
        $region72: #{tpu_custom_call.1} parent=67 // pred_fallthru
          _
      $region68: #{tpu_custom_call.1} parent=5 // pred_fallthru
        _
    $region6: #{tpu_custom_call.1} parent=1 // loop_footer
      %s23 = sadd.s32 1, %s19
    $region7: #{tpu_custom_call.1} parent=1 // loop_footer_branch
      %18 = sbr.rel target = $region3
    $region8: #{tpu_custom_call.1} parent=1 // loop_exit
      _
    %1113 = vsyncpa [#allocation3], 1
    %s1114 = scalar_lea.sflag [#allocation3], 1
    %1115 = vsyncpa %s1114, 1

</llo_original>
